<compile_context>
chip_gen: v5e
topology: v5e:2x2
jax: 0.10.0
libtpu: 0.0.40
codegen_flags: <defaults>
</compile_context>

<pallas_src>
import functools

import jax
import jax.numpy as jnp
import numpy as np
from jax import lax
from jax.experimental import pallas as pl
from jax.experimental.pallas import tpu as pltpu


# ---------------------------------------------------------------------------
# helpers
# ---------------------------------------------------------------------------
def _round_up(x: int, m: int) -> int:
    return ((x + m - 1) // m) * m


def _pick_tile_lane(dim_padded: int, pref: int) -> int:
    """Largest multiple of 128 that divides dim_padded and is <= pref."""
    best = 128
    t = 256
    while t <= min(pref, dim_padded):
        if dim_padded % t == 0:
            best = t
        t += 128
    return min(best, dim_padded)


def _gelu_tanh(x):
    c = 0.7978845608028654  # sqrt(2/pi)
    return 0.5 * x * (1.0 + jnp.tanh(c * (x + 0.044715 * x * x * x)))


# ---------------------------------------------------------------------------
# fused linear:  Y = act( LN?(X) @ W + b ) (+ residual)
# ---------------------------------------------------------------------------
def _linear_kernel(*refs, activation, has_residual, has_ln, k_real, eps):
    idx = 0
    x_ref = refs[idx]; idx += 1
    w_ref = refs[idx]; idx += 1
    b_ref = refs[idx]; idx += 1
    if has_ln:
        lnw_ref = refs[idx]; idx += 1
        lnb_ref = refs[idx]; idx += 1
    if has_residual:
        res_ref = refs[idx]; idx += 1
    o_ref = refs[idx]; idx += 1
    acc_ref = refs[idx]

    k = pl.program_id(2)

    @pl.when(k == 0)
    def _():
        acc_ref[...] = jnp.zeros_like(acc_ref)

    x = x_ref[...]
    if has_ln:
        # LayerNorm over the (single) K tile; mean/var use the *real* feature
        # count so zero-padded columns do not perturb the statistics, and the
        # zero-padded ln weight/bias make padded columns contribute 0.
        xf = x.astype(jnp.float32)
        inv_k = 1.0 / k_real
        mean = jnp.sum(xf, axis=-1, keepdims=True) * inv_k
        ex2 = jnp.sum(xf * xf, axis=-1, keepdims=True) * inv_k
        var = ex2 - mean * mean
        inv = lax.rsqrt(var + eps)
        xf = (xf - mean) * inv * lnw_ref[...].astype(jnp.float32) \
            + lnb_ref[...].astype(jnp.float32)
        x = xf.astype(x_ref.dtype)

    # native-dtype operands, f32 accumulation on the MXU
    acc_ref[...] += jnp.dot(x, w_ref[...], preferred_element_type=jnp.float32)

    @pl.when(k == pl.num_programs(2) - 1)
    def _():
        y = acc_ref[...] + b_ref[...].astype(jnp.float32)
        if activation == "gelu":
            y = _gelu_tanh(y)
        if has_residual:
            y = y + res_ref[...].astype(jnp.float32)
        o_ref[...] = y.astype(o_ref.dtype)


def linear(x, w, b, *, activation=None, residual=None, ln=None,
           tm_pref=512, tn_pref=512, tk_pref=512, eps=1e-5):
    M, K = x.shape
    Kw, N = w.shape
    assert K == Kw, (x.shape, w.shape)
    has_residual = residual is not None
    has_ln = ln is not None

    # --- tile selection (always real tiling, never full-extent fallback) ---
    tm = min(tm_pref, _round_up(M, 8))
    Mp = _round_up(M, tm)
    Kp = _round_up(K, 128)
    Np = _round_up(N, 128)
    tk = Kp if has_ln else _pick_tile_lane(Kp, tk_pref)   # LN needs full row
    tn = _pick_tile_lane(Np, tn_pref)

    # --- zero-pad operands to tile multiples (zeros are matmul-neutral) ---
    xp = x if (Mp, Kp) == (M, K) else jnp.pad(x, ((0, Mp - M), (0, Kp - K)))
    wp = w if (Kp, Np) == (K, N) else jnp.pad(w, ((0, Kp - K), (0, Np - N)))
    bp = b.reshape(1, N)
    if Np != N:
        bp = jnp.pad(bp, ((0, 0), (0, Np - N)))

    in_specs = [
        pl.BlockSpec((tm, tk), lambda i, j, k: (i, k)),
        pl.BlockSpec((tk, tn), lambda i, j, k: (k, j)),
        pl.BlockSpec((1, tn), lambda i, j, k: (0, j)),
    ]
    args = [xp, wp, bp]

    if has_ln:
        lnw, lnb = ln
        lnw = lnw.reshape(1, K)
        lnb = lnb.reshape(1, K)
        if Kp != K:
            lnw = jnp.pad(lnw, ((0, 0), (0, Kp - K)))
            lnb = jnp.pad(lnb, ((0, 0), (0, Kp - K)))
        in_specs += [pl.BlockSpec((1, tk), lambda i, j, k: (0, k)),
                     pl.BlockSpec((1, tk), lambda i, j, k: (0, k))]
        args += [lnw, lnb]

    if has_residual:
        rp = residual
        if (Mp, Np) != (M, N):
            rp = jnp.pad(rp, ((0, Mp - M), (0, Np - N)))
        in_specs.append(pl.BlockSpec((tm, tn), lambda i, j, k: (i, j)))
        args.append(rp)

    kernel = functools.partial(
        _linear_kernel, activation=activation, has_residual=has_residual,
        has_ln=has_ln, k_real=float(K), eps=eps)

    out = pl.pallas_call(
        kernel,
        out_shape=jax.ShapeDtypeStruct((Mp, Np), x.dtype),
        grid_spec=pltpu.PrefetchScalarGridSpec(
            num_scalar_prefetch=0,
            grid=(Mp // tm, Np // tn, Kp // tk),
            in_specs=in_specs,
            out_specs=pl.BlockSpec((tm, tn), lambda i, j, k: (i, j)),
            scratch_shapes=[pltpu.VMEM((tm, tn), jnp.float32)],
        ),
        compiler_params=pltpu.CompilerParams(
            dimension_semantics=("parallel", "parallel", "arbitrary")),
    )(*args)

    if (Mp, Np) != (M, N):
        out = out[:M, :N]
    return out


# ---------------------------------------------------------------------------
# standalone LayerNorm (only used for the final norm; others fused into linear)
# ---------------------------------------------------------------------------
def _layernorm_kernel(x_ref, w_ref, b_ref, o_ref, *, eps):
    x = x_ref[...].astype(jnp.float32)
    mean = jnp.mean(x, axis=-1, keepdims=True)
    xc = x - mean
    var = jnp.mean(xc * xc, axis=-1, keepdims=True)
    inv = lax.rsqrt(var + eps)
    y = xc * inv * w_ref[...].astype(jnp.float32) + b_ref[...].astype(jnp.float32)
    o_ref[...] = y.astype(o_ref.dtype)


def layernorm(x, w, b, *, eps=1e-5, tm_pref=512):
    M, C = x.shape
    tm = min(tm_pref, _round_up(M, 8))
    Mp = _round_up(M, tm)
    xp = x if Mp == M else jnp.pad(x, ((0, Mp - M), (0, 0)))
    out = pl.pallas_call(
        functools.partial(_layernorm_kernel, eps=eps),
        out_shape=jax.ShapeDtypeStruct((Mp, C), x.dtype),
        grid_spec=pltpu.PrefetchScalarGridSpec(
            num_scalar_prefetch=0,
            grid=(Mp // tm,),
            in_specs=[pl.BlockSpec((tm, C), lambda i: (i, 0)),
                      pl.BlockSpec((1, C), lambda i: (0, 0)),
                      pl.BlockSpec((1, C), lambda i: (0, 0))],
            out_specs=pl.BlockSpec((tm, C), lambda i: (i, 0)),
        ),
        compiler_params=pltpu.CompilerParams(dimension_semantics=("parallel",)),
    )(xp, w.reshape(1, C), b.reshape(1, C))
    return out if Mp == M else out[:M]


# ---------------------------------------------------------------------------
# attention: per-batch-element, all heads per grid step, lane-dense output
# ---------------------------------------------------------------------------
def _attention_kernel(qkv_ref, o_ref, *, num_heads, scale):
    # qkv_ref: (N, 3E) with columns [ q_heads | k_heads | v_heads ]
    # o_ref:   (N, E)  with head h occupying columns [h*Dh, (h+1)*Dh)
    E = o_ref.shape[-1]
    Dh = E // num_heads
    qkv = qkv_ref[...]
    for h in range(num_heads):
        q = qkv[:, h * Dh:(h + 1) * Dh] * scale              # scale Q, not S
        k = qkv[:, E + h * Dh:E + (h + 1) * Dh]
        v = qkv[:, 2 * E + h * Dh:2 * E + (h + 1) * Dh]
        # contract last-last: no k.T relayout, feeds the MXU directly
        s = lax.dot_general(q, k, (((1,), (1,)), ((), ())),
                            preferred_element_type=jnp.float32)
        m = jnp.max(s, axis=-1, keepdims=True)
        e = jnp.exp(s - m)
        p = e * pl.reciprocal(jnp.sum(e, axis=-1, keepdims=True), approx=True)
        o = jnp.dot(p.astype(v.dtype), v, preferred_element_type=jnp.float32)
        o_ref[:, h * Dh:(h + 1) * Dh] = o.astype(o_ref.dtype)


def attention(qkv, *, num_heads, scale):
    # qkv: (B, N, 3E) -> (B, N, E), grid over batch (all heads per step)
    B, N, threeE = qkv.shape
    E = threeE // 3
    kernel = functools.partial(_attention_kernel, num_heads=num_heads, scale=scale)
    return pl.pallas_call(
        kernel,
        out_shape=jax.ShapeDtypeStruct((B, N, E), qkv.dtype),
        grid_spec=pltpu.PrefetchScalarGridSpec(
            num_scalar_prefetch=0,
            grid=(B,),
            in_specs=[pl.BlockSpec((None, N, threeE), lambda b: (b, 0, 0))],
            out_specs=pl.BlockSpec((None, N, E), lambda b: (b, 0, 0)),
        ),
        compiler_params=pltpu.CompilerParams(dimension_semantics=("parallel",)),
    )(qkv)


# ---------------------------------------------------------------------------
# ViT forward
# ---------------------------------------------------------------------------
def vit_forward(params, x, *, patch_size, num_heads):
    B, C, H, W = x.shape
    P = patch_size
    E = params["patch_w"].shape[1]
    Hp, Wp = H // P, W // P
    Dh = E // num_heads
    scale = Dh ** (-0.5)

    # patch embed: strided conv == patchify (pure layout) + Pallas linear
    xp = x.reshape(B, C, Hp, P, Wp, P).transpose(0, 2, 4, 1, 3, 5)
    xp = xp.reshape(B * Hp * Wp, C * P * P)
    tok = linear(xp, params["patch_w"], params["patch_b"])
    tok = tok.reshape(B, Hp * Wp, E)

    cls = jnp.broadcast_to(params["cls_token"], (B, 1, E))
    seq = jnp.concatenate([cls, tok], axis=1) + params["pos_embed"]
    N = seq.shape[1]
    xf = seq.reshape(B * N, E)

    for blk in params["blocks"]:
        # ---- attention sub-block: LN1 fused into the qkv projection ----
        qkv = linear(xf, blk["qkv_w"], blk["qkv_b"],
                     ln=(blk["ln1_w"], blk["ln1_b"]))               # (B*N, 3E)
        ao = attention(qkv.reshape(B, N, 3 * E),
                       num_heads=num_heads, scale=scale)            # (B, N, E)
        xf = linear(ao.reshape(B * N, E), blk["proj_w"], blk["proj_b"],
                    residual=xf)                                    # fused +res

        # ---- MLP sub-block: LN2 + GELU fused into fc1, residual into fc2 ----
        hm = linear(xf, blk["fc1_w"], blk["fc1_b"],
                    ln=(blk["ln2_w"], blk["ln2_b"]), activation="gelu")
        xf = linear(hm, blk["fc2_w"], blk["fc2_b"], residual=xf)

    xf = layernorm(xf, params["norm_w"], params["norm_b"])
    return xf.reshape(B, N, E)[:, 0]


# ---------------------------------------------------------------------------
# parameter construction (torch-Linear-style weights stored as (in, out))
# ---------------------------------------------------------------------------
def init_params(key, *, img_size, patch_size, in_chans, embed_dim, depth,
                num_heads, mlp_ratio):
    assert embed_dim % num_heads == 0
    num_patches = (img_size // patch_size) ** 2
    hidden = int(embed_dim * mlp_ratio)
    pdim = in_chans * patch_size * patch_size

    keys = iter(jax.random.split(key, 8 + depth * 8))

    def nrm(shape, std=0.02):
        return jax.random.normal(next(keys), shape, dtype=jnp.float32) * std

    params = {
        "patch_w": nrm((pdim, embed_dim)),
        "patch_b": nrm((embed_dim,)),
        "cls_token": nrm((1, 1, embed_dim)),
        "pos_embed": nrm((1, num_patches + 1, embed_dim)),
        "norm_w": jnp.ones((embed_dim,), jnp.float32),
        "norm_b": jnp.zeros((embed_dim,), jnp.float32),
        "blocks": [],
    }
    for _ in range(depth):
        params["blocks"].append({
            "ln1_w": jnp.ones((embed_dim,), jnp.float32),
            "ln1_b": jnp.zeros((embed_dim,), jnp.float32),
            "qkv_w": nrm((embed_dim, 3 * embed_dim)),
            "qkv_b": nrm((3 * embed_dim,)),
            "proj_w": nrm((embed_dim, embed_dim)),
            "proj_b": nrm((embed_dim,)),
            "ln2_w": jnp.ones((embed_dim,), jnp.float32),
            "ln2_b": jnp.zeros((embed_dim,), jnp.float32),
            "fc1_w": nrm((embed_dim, hidden)),
            "fc1_b": nrm((hidden,)),
            "fc2_w": nrm((hidden, embed_dim)),
            "fc2_b": nrm((embed_dim,)),
        })
    return params


# ---------------------------------------------------------------------------
# host-side float32 numpy reference (mirrors the PyTorch forward semantics)
# ---------------------------------------------------------------------------
def _np_ln(x, w, b, eps=1e-5):
    m = x.mean(-1, keepdims=True)
    v = ((x - m) ** 2).mean(-1, keepdims=True)
    return (x - m) / np.sqrt(v + eps) * w + b


def _np_gelu(x):
    c = 0.7978845608028654
    return 0.5 * x * (1.0 + np.tanh(c * (x + 0.044715 * x * x * x)))


def _np_softmax(x):
    m = x.max(-1, keepdims=True)
    e = np.exp(x - m)
    return e / e.sum(-1, keepdims=True)


def vit_reference(params, x, *, patch_size, num_heads):
    g = lambda a: np.asarray(a, dtype=np.float32)
    x = g(x)
    B, C, H, W = x.shape
    P = patch_size
    E = params["patch_w"].shape[1]
    Hp, Wp = H // P, W // P
    Dh = E // num_heads

    xp = x.reshape(B, C, Hp, P, Wp, P).transpose(0, 2, 4, 1, 3, 5)
    xp = xp.reshape(B * Hp * Wp, C * P * P)
    tok = (xp @ g(params["patch_w"]) + g(params["patch_b"])).reshape(B, Hp * Wp, E)
    cls = np.broadcast_to(g(params["cls_token"]), (B, 1, E))
    seq = np.concatenate([cls, tok], axis=1) + g(params["pos_embed"])
    N = seq.shape[1]
    xf = seq.reshape(B * N, E)

    for blk in params["blocks"]:
        h = _np_ln(xf, g(blk["ln1_w"]), g(blk["ln1_b"]))
        qkv = h @ g(blk["qkv_w"]) + g(blk["qkv_b"])
        qkv = qkv.reshape(B, N, 3, num_heads, Dh).transpose(2, 0, 3, 1, 4)
        q, k, v = qkv[0], qkv[1], qkv[2]                       # (B, H, N, Dh)
        attn = _np_softmax((q @ k.transpose(0, 1, 3, 2)) * (Dh ** -0.5))
        ao = (attn @ v).transpose(0, 2, 1, 3).reshape(B * N, E)
        xf = xf + (ao @ g(blk["proj_w"]) + g(blk["proj_b"]))
        h2 = _np_ln(xf, g(blk["ln2_w"]), g(blk["ln2_b"]))
        hm = _np_gelu(h2 @ g(blk["fc1_w"]) + g(blk["fc1_b"]))
        xf = xf + (hm @ g(blk["fc2_w"]) + g(blk["fc2_b"]))

    xf = _np_ln(xf, g(params["norm_w"]), g(params["norm_b"]))
    return xf.reshape(B, N, E)[:, 0]


# ---------------------------------------------------------------------------
if __name__ == "__main__":
    # Small shapes consistent with the module: img 32, patch 16 -> 4 patches,
    # seq = 5, embed 64, 4 heads, depth 2, MLP hidden 256, batch 2.
    IMG, PATCH, CHANS = 32, 16, 3
    EMBED, DEPTH, HEADS, MLP_RATIO = 64, 2, 4, 4.0
    B = 2

    root = jax.random.PRNGKey(0)
    kp, kx = jax.random.split(root)
    params = init_params(kp, img_size=IMG, patch_size=PATCH, in_chans=CHANS,
                         embed_dim=EMBED, depth=DEPTH, num_heads=HEADS,
                         mlp_ratio=MLP_RATIO)
    x = jax.random.normal(kx, (B, CHANS, IMG, IMG), dtype=jnp.float32)

    out = vit_forward(params, x, patch_size=PATCH, num_heads=HEADS)
    out = jax.block_until_ready(out)
    assert out.shape == (B, EMBED), out.shape

    ref = vit_reference(params, x, patch_size=PATCH, num_heads=HEADS)
    max_err = float(np.abs(np.asarray(out) - ref).max())
    assert np.allclose(np.asarray(out), ref, rtol=2e-2, atol=2e-2), max_err

    print("KERNEL_OK")
</pallas_src>

<mosaic_0001>
module attributes {stable_mosaic.version = 11 : i64} {
  func.func @_linear_kernel(%arg0: i32, %arg1: i32, %arg2: i32, %arg3: memref<8x384xf32, #tpu.memory_space<vmem>>, %arg4: memref<384x128xf32, #tpu.memory_space<vmem>>, %arg5: memref<1x128xf32, #tpu.memory_space<vmem>>, %arg6: memref<8x128xf32, #tpu.memory_space<vmem>>, %arg7: memref<8x128xf32, #tpu.memory_space<vmem>>) attributes {dimension_semantics = [#tpu.dimension_semantics<parallel>, #tpu.dimension_semantics<parallel>, #tpu.dimension_semantics<arbitrary>], iteration_bounds = array<i64: 1, 1, 2>, scalar_prefetch = 0 : i64, scratch_operands = 1 : i64, tpu.core_type = #tpu.core_type<tc>, window_params = [{transform_indices = @transform_0, window_bounds = array<i64: 8, 384>}, {transform_indices = @transform_1, window_bounds = array<i64: 384, 128>}, {transform_indices = @transform_2, window_bounds = array<i64: 1, 128>}, {transform_indices = @transform_3, window_bounds = array<i64: 8, 128>}]} {
    %c0_i32 = arith.constant 0 : i32
    %0 = arith.cmpi eq, %arg2, %c0_i32 : i32
    %1 = arith.extui %0 : i1 to i32
    %c0_i32_0 = arith.constant 0 : i32
    %2 = arith.cmpi ne, %1, %c0_i32_0 : i32
    scf.if %2 {
      %cst_9 = arith.constant 0.000000e+00 : f32
      %12 = vector.broadcast %cst_9 : f32 to vector<8x128xf32>
      %c0_10 = arith.constant 0 : index
      %c0_11 = arith.constant 0 : index
      %13 = vector.load %arg7[%c0_10, %c0_11] : memref<8x128xf32, #tpu.memory_space<vmem>>, vector<8x128xf32>
      tpu.vector_store %arg7[%c0_10, %c0_11], %12 {strides = array<i32>} : memref<8x128xf32, #tpu.memory_space<vmem>>, vector<8x128xf32>,
    } else {
    }
    %c0 = arith.constant 0 : index
    %c0_1 = arith.constant 0 : index
    %3 = vector.load %arg3[%c0, %c0_1] : memref<8x384xf32, #tpu.memory_space<vmem>>, vector<8x384xf32>
    %c0_2 = arith.constant 0 : index
    %c0_3 = arith.constant 0 : index
    %4 = vector.load %arg7[%c0_2, %c0_3] : memref<8x128xf32, #tpu.memory_space<vmem>>, vector<8x128xf32>
    %c0_4 = arith.constant 0 : index
    %c0_5 = arith.constant 0 : index
    %5 = vector.load %arg4[%c0_4, %c0_5] : memref<384x128xf32, #tpu.memory_space<vmem>>, vector<384x128xf32>
    %cst = arith.constant dense<0.000000e+00> : vector<8x128xf32>
    %6 = tpu.matmul %3, %5, %cst {dimension_numbers = #tpu.dot_dimension_numbers<[1], [0], [0], [1], [0, 0, 1, 1], [], []>} : vector<8x384xf32>, vector<384x128xf32>, vector<8x128xf32> -> vector<8x128xf32>
    %7 = arith.addf %4, %6 : vector<8x128xf32>
    %c0_6 = arith.constant 0 : index
    %c0_7 = arith.constant 0 : index
    %8 = vector.load %arg7[%c0_6, %c0_7] : memref<8x128xf32, #tpu.memory_space<vmem>>, vector<8x128xf32>
    tpu.vector_store %arg7[%c0_6, %c0_7], %7 {strides = array<i32>} : memref<8x128xf32, #tpu.memory_space<vmem>>, vector<8x128xf32>,
    %c1_i32 = arith.constant 1 : i32
    %9 = arith.cmpi eq, %arg2, %c1_i32 : i32
    %10 = arith.extui %9 : i1 to i32
    %c0_i32_8 = arith.constant 0 : i32
    %11 = arith.cmpi ne, %10, %c0_i32_8 : i32
    scf.if %11 {
      %c0_9 = arith.constant 0 : index
      %c0_10 = arith.constant 0 : index
      %12 = vector.load %arg7[%c0_9, %c0_10] : memref<8x128xf32, #tpu.memory_space<vmem>>, vector<8x128xf32>
      %c0_11 = arith.constant 0 : index
      %c0_12 = arith.constant 0 : index
      %13 = vector.load %arg5[%c0_11, %c0_12] : memref<1x128xf32, #tpu.memory_space<vmem>>, vector<1x128xf32>
      %14 = vector.broadcast %13 : vector<1x128xf32> to vector<8x128xf32>
      %15 = arith.addf %12, %14 : vector<8x128xf32>
      %c0_13 = arith.constant 0 : index
      %c0_14 = arith.constant 0 : index
      %16 = vector.load %arg6[%c0_13, %c0_14] : memref<8x128xf32, #tpu.memory_space<vmem>>, vector<8x128xf32>
      tpu.vector_store %arg6[%c0_13, %c0_14], %15 {strides = array<i32>} : memref<8x128xf32, #tpu.memory_space<vmem>>, vector<8x128xf32>,
    } else {
    }
    return
  }
  func.func @transform_0(%arg0: i32, %arg1: i32, %arg2: i32) -> (i32, i32) {
    %c0_i32 = arith.constant 0 : i32
    return %arg0, %arg2 : i32, i32
  }
  func.func @transform_1(%arg0: i32, %arg1: i32, %arg2: i32) -> (i32, i32) {
    %c0_i32 = arith.constant 0 : i32
    return %arg2, %arg1 : i32, i32
  }
  func.func @transform_2(%arg0: i32, %arg1: i32, %arg2: i32) -> (i32, i32) {
    %c0_i32 = arith.constant 0 : i32
    %c0_i32_0 = arith.constant 0 : i32
    return %c0_i32, %arg1 : i32, i32
  }
  func.func @transform_3(%arg0: i32, %arg1: i32, %arg2: i32) -> (i32, i32) {
    %c0_i32 = arith.constant 0 : i32
    return %arg0, %arg1 : i32, i32
  }
}

</mosaic_0001>

<llo_original>
// kernel: tpu_custom_call.1
$region0: #{tpu_custom_call.1}
  #allocation0 [shape = 'u32[]', space=smem, size = 0x4, offset = 0x4, fixed_abs, tag = 'smem constant byte address 0x4 - core index']
  #allocation1 [shape = 'u32[72,128]{1,0:T(1,128)}', space=vmem, size = 0x9000, scoped, tag = 'internal scratch']
  #allocation2 [shape = 'f32[8,128]{1,0:T(8,128)}', space=vmem, size = 0x1000, scoped, tag = 'scratch operand']
  %s0 = inlined_call_operand.hbm [shape: f32[8,768], index: 0, kind: input, shape index: {}]
  %s1 = inlined_call_operand.hbm [shape: f32[768,128], index: 1, kind: input, shape index: {}]
  %s2 = inlined_call_operand.vmem [shape: f32[1,128], index: 2, kind: input, shape index: {}]
  %s3 = inlined_call_operand.hbm [shape: f32[8,128], index: 3, kind: output, shape index: {}]
  %s4 = sld [smem:[#allocation0]]
  $region61: #{tpu_custom_call.1} parent=0
    _
  %s6 = ssub.s32 1, %s4
  %s7 = scalar_select 0, %s6, %s4
  $region1: #{tpu_custom_call.1} parent=0
    #allocation3 [shape = 'u8[24576]{0}', space=vmem, size = 0x6000, scoped, tag = 'input window, operand 0']
    #allocation4 [shape = 's32[2]{0}', space=sflag, size = 0x8, scoped, tag = 'scoped memory for tpu_custom_call.1']
    #allocation5 [shape = 's32[2]{0}', space=sflag, size = 0x8, scoped, tag = 'scoped memory for tpu_custom_call.1']
    #allocation6 [shape = 'u8[393216]{0}', space=vmem, size = 0x60000, scoped, tag = 'input window, operand 1']
    #allocation7 [shape = 's32[2]{0}', space=sflag, size = 0x8, scoped, tag = 'scoped memory for tpu_custom_call.1']
    #allocation8 [shape = 'u8[4096]{0}', space=vmem, size = 0x1000, scoped, tag = 'output window, operand 0, single buffered']
    %8 = vsyncpa [#allocation4], 0
    %s9 = scalar_lea.sflag [#allocation4], 1
    %10 = vsyncpa %s9, 0
    %11 = vsyncpa [#allocation7], 0
    %s12 = scalar_lea.sflag [#allocation7], 1
    %13 = vsyncpa %s12, 0
    %14 = vsyncpa [#allocation5], 0
    loop: start=0, step=1, limit=4
    $region2: #{tpu_custom_call.1} parent=1 // loop_pre_header
      _
    $region3: #{tpu_custom_call.1} parent=1 // loop_header
      %s16 = sphi 0, %s20
      %p17 = scmp.ge.s32.totalorder %s16, 4
      %s23 = sphi 0, %s42
      %s24 = sphi 0, %s38
      %s25 = sphi 0, %s34
      %s26 = sphi 0, %s23
      %s27 = sphi 0, %s24
      %s28 = sphi 0, %s25
      %s29 = sphi 0, %s26
      %s30 = sphi 0, %s27
      %s31 = sphi 0, %s28
      %s47 = sphi 0, %s49
      %s50 = sphi 0, %s47
      %s51 = sphi 0, %s50
      %s67 = sphi 0, %s51
      %s75 = sphi 0, %s77
      %s78 = sphi 0, %s75
      %s79 = sphi 0, %s78
      %s95 = sphi 0, %s79
      %s101 = sphi 0, %s103
      %s104 = sphi 0, %s101
      %s105 = sphi 0, %s104
      %s121 = sphi 0, %s105
      %s129 = sphi 0, %s131
      %s132 = sphi 0, %s129
      %s133 = sphi 0, %s132
      %s149 = sphi 0, %s133
    $region4: #{tpu_custom_call.1} parent=1 // loop_header_branch
      %19 = sbr.rel (%p17) target = $region8
    $region5: #{tpu_custom_call.1} parent=1 // loop_body
      %s21 = ssub.s32 %s16, 1
      %s22 = ssub.s32 %s16, 2
      %s32 = sadd.s32 1, %s25
      %p33 = scmp.ge.s32.totalorder %s32, 2
      %s34 = scalar_select %p33, 0, %s32
      %s35 = sadd.s32 1, %s24
      %s36 = scalar_select %p33, %s35, %s24
      %p37 = scmp.ge.s32.totalorder %s36, 1
      %s38 = scalar_select %p37, 0, %s36
      %s39 = sadd.s32 1, %s23
      %s40 = scalar_select %p37, %s39, %s23
      %p41 = scmp.ge.s32.totalorder %s40, 1
      %s42 = scalar_select %p41, 0, %s40
      %s43 = ssub.s32 %s23, %s42
      %s44 = ssub.s32 %s25, %s34
      %s45 = sor.u32 %s43, %s44
      %p46 = scmp.eq.s32.totalorder %s45, 0
      %s48 = sadd.s32 %s47, 1
      %s49 = scalar_select %p46, %s47, %s48
      %p52 = pneg %p46
      %p53 = scmp.eq.s32.totalorder %s16, 1
      %p54 = por %p52, %p53
      %p55 = scmp.ne.s32.totalorder %s47, %s50
      %p56 = scmp.eq.s32.totalorder %s16, 0
      %p57 = por %p55, %p56
      %p58 = scmp.ne.s32.totalorder %s47, %s50
      %p59 = scmp.eq.s32.totalorder %s21, 1
      %p60 = por %p58, %p59
      %p61 = scmp.ne.s32.totalorder %s50, %s51
      %p62 = scmp.eq.s32.totalorder %s21, 0
      %p63 = por %p61, %p62
      %p64 = scmp.ne.s32.totalorder %s50, %s51
      %p65 = scmp.eq.s32.totalorder %s22, 1
      %p66 = por %p64, %p65
      %p68 = scmp.ne.s32.totalorder %s51, %s67
      %p69 = scmp.eq.s32.totalorder %s22, 0
      %p70 = por %p68, %p69
      %s71 = ssub.s32 %s25, %s34
      %s72 = ssub.s32 %s24, %s38
      %s73 = sor.u32 %s71, %s72
      %p74 = scmp.eq.s32.totalorder %s73, 0
      %s76 = sadd.s32 %s75, 1
      %s77 = scalar_select %p74, %s75, %s76
      %p80 = pneg %p74
      %p81 = scmp.eq.s32.totalorder %s16, 1
      %p82 = por %p80, %p81
      %p83 = scmp.ne.s32.totalorder %s75, %s78
      %p84 = scmp.eq.s32.totalorder %s16, 0
      %p85 = por %p83, %p84
      %p86 = scmp.ne.s32.totalorder %s75, %s78
      %p87 = scmp.eq.s32.totalorder %s21, 1
      %p88 = por %p86, %p87
      %p89 = scmp.ne.s32.totalorder %s78, %s79
      %p90 = scmp.eq.s32.totalorder %s21, 0
      %p91 = por %p89, %p90
      %p92 = scmp.ne.s32.totalorder %s78, %s79
      %p93 = scmp.eq.s32.totalorder %s22, 1
      %p94 = por %p92, %p93
      %p96 = scmp.ne.s32.totalorder %s79, %s95
      %p97 = scmp.eq.s32.totalorder %s22, 0
      %p98 = por %p96, %p97
      %s99 = ssub.s32 %s24, %s38
      %p100 = scmp.eq.s32.totalorder %s99, 0
      %s102 = sadd.s32 %s101, 1
      %s103 = scalar_select %p100, %s101, %s102
      %p106 = pneg %p100
      %p107 = scmp.eq.s32.totalorder %s16, 1
      %p108 = por %p106, %p107
      %p109 = scmp.ne.s32.totalorder %s101, %s104
      %p110 = scmp.eq.s32.totalorder %s16, 0
      %p111 = por %p109, %p110
      %p112 = scmp.ne.s32.totalorder %s101, %s104
      %p113 = scmp.eq.s32.totalorder %s21, 1
      %p114 = por %p112, %p113
      %p115 = scmp.ne.s32.totalorder %s104, %s105
      %p116 = scmp.eq.s32.totalorder %s21, 0
      %p117 = por %p115, %p116
      %p118 = scmp.ne.s32.totalorder %s104, %s105
      %p119 = scmp.eq.s32.totalorder %s22, 1
      %p120 = por %p118, %p119
      %p122 = scmp.ne.s32.totalorder %s105, %s121
      %p123 = scmp.eq.s32.totalorder %s22, 0
      %p124 = por %p122, %p123
      %s125 = ssub.s32 %s23, %s42
      %s126 = ssub.s32 %s24, %s38
      %s127 = sor.u32 %s125, %s126
      %p128 = scmp.eq.s32.totalorder %s127, 0
      %s130 = sadd.s32 %s129, 1
      %s131 = scalar_select %p128, %s129, %s130
      %p134 = pneg %p128
      %p135 = scmp.eq.s32.totalorder %s16, 1
      %p136 = por %p134, %p135
      %p137 = scmp.ne.s32.totalorder %s129, %s132
      %p138 = scmp.eq.s32.totalorder %s16, 0
      %p139 = por %p137, %p138
      %p140 = scmp.ne.s32.totalorder %s129, %s132
      %p141 = scmp.eq.s32.totalorder %s21, 1
      %p142 = por %p140, %p141
      %p143 = scmp.ne.s32.totalorder %s132, %s133
      %p144 = scmp.eq.s32.totalorder %s21, 0
      %p145 = por %p143, %p144
      %p146 = scmp.ne.s32.totalorder %s132, %s133
      %p147 = scmp.eq.s32.totalorder %s22, 1
      %p148 = por %p146, %p147
      %p150 = scmp.ne.s32.totalorder %s133, %s149
      %p151 = scmp.eq.s32.totalorder %s22, 0
      %p152 = por %p150, %p151
      %p153 = scmp.le.s32.totalorder 1, %s16
      %p154 = scmp.lt.s32.totalorder %s16, 3
      %p155 = pnand %p153, %p154
      %p156 = pneg %p155
      // Predicated region
      $region9: #{tpu_custom_call.1} parent=5 // pred_check
        _
      $region10: #{tpu_custom_call.1} parent=5 // pred_check_branch
        %158 = sbr.rel (%p155) target = $region12
      $region11: #{tpu_custom_call.1} parent=5 // pred_region
        %s159 = ssub.s32 %s16, 1
        // Predicated region
        $region13: #{tpu_custom_call.1} parent=11 // pred_check
          %p160 = pneg %p117
        $region14: #{tpu_custom_call.1} parent=11 // pred_check_branch
          %162 = sbr.rel (%p160) target = $region16
        $region15: #{tpu_custom_call.1} parent=11 // pred_region
          %p163 = scmp.lt.s32.totalorder %s27, 0
          %s164 = scalar_select %p163, %s27, 0
          %s165 = scalar_lea.vmem %s2, %s164
        $region16: #{tpu_custom_call.1} parent=11 // pred_fallthru
          _
      $region12: #{tpu_custom_call.1} parent=5 // pred_fallthru
        _
      %p166 = scmp.lt.s32.totalorder %s16, 2
      // Predicated region
      $region17: #{tpu_custom_call.1} parent=5 // pred_check
        %p167 = pneg %p166
      $region18: #{tpu_custom_call.1} parent=5 // pred_check_branch
        %169 = sbr.rel (%p167) target = $region20
      $region19: #{tpu_custom_call.1} parent=5 // pred_region
        // Predicated region
        $region21: #{tpu_custom_call.1} parent=19 // pred_check
          %p170 = pneg %p57
        $region22: #{tpu_custom_call.1} parent=19 // pred_check_branch
          %172 = sbr.rel (%p170) target = $region24
        $region23: #{tpu_custom_call.1} parent=19 // pred_region
          %s173 = sand.u32 %s47, 1
          %s174 = scalar_lea.sflag [#allocation4], %s173
          %s175 = sand.u32 %s47, 1
          %s176 = smul.addr %s175, 24
          %s177 = scalar_lea.vmem [#allocation3], %s176
          %s178 = smul.u32 3, %s25
          %180 = vsyncadd %s174, 0
          %s181 = smul.addr %s23, 6
          %s182 = sadd.s32 %s178, %s181
          %s183 = smul.addr %s182, 8
          %s184 = scalar_lea.hbm %s0, %s183
          %s186 = sshll.u32 %s184, 4
          %s187 = int_to_ptr.hbm [resolvable:$true] %s186
          %s188 = sshll.u32 %s177, 4
          %s189 = int_to_ptr.vmem [resolvable:$true] %s188
          %191 = dma.hbm_to_vmem [thread:$0]  %s187, 384, %s189, %s174
        $region24: #{tpu_custom_call.1} parent=19 // pred_fallthru
          _
        // Predicated region
        $region25: #{tpu_custom_call.1} parent=19 // pred_check
          %p192 = pneg %p85
        $region26: #{tpu_custom_call.1} parent=19 // pred_check_branch
          %194 = sbr.rel (%p192) target = $region28
        $region27: #{tpu_custom_call.1} parent=19 // pred_region
          %s195 = sand.u32 %s75, 1
          %s196 = scalar_lea.sflag [#allocation7], %s195
          %s197 = sand.u32 %s75, 1
          %s198 = smul.addr %s197, 384
          %s199 = scalar_lea.vmem [#allocation6], %s198
          %s200 = smul.u32 48, %s25
          %202 = vsyncadd %s196, 0
          %s203 = sadd.s32 %s24, %s200
          %s204 = smul.addr %s203, 8
          %s205 = scalar_lea.hbm %s1, %s204
          %s206 = sshll.u32 %s205, 4
          %s207 = int_to_ptr.hbm [resolvable:$true] %s206
          %s208 = sshll.u32 %s199, 4
          %s209 = int_to_ptr.vmem [resolvable:$true] %s208
          %214 = dma.hbm_to_vmem [thread:$0]  %s207, 6144, %s209, %s196, 128, 128, 8
        $region28: #{tpu_custom_call.1} parent=19 // pred_fallthru
          _
      $region20: #{tpu_custom_call.1} parent=5 // pred_fallthru
        _
      %p215 = scmp.le.s32.totalorder 1, %s16
      %p216 = scmp.lt.s32.totalorder %s16, 3
      %p217 = pnand %p215, %p216
      %p218 = pneg %p217
      // Predicated region
      $region29: #{tpu_custom_call.1} parent=5 // pred_check
        _
      $region30: #{tpu_custom_call.1} parent=5 // pred_check_branch
        %220 = sbr.rel (%p217) target = $region32
      $region31: #{tpu_custom_call.1} parent=5 // pred_region
        %s221 = ssub.s32 %s16, 1
        %s222 = sand.u32 %s50, 1
        %s223 = scalar_lea.sflag [#allocation4], %s222
        %s224 = sand.u32 %s50, 1
        %s225 = smul.addr %s224, 24
        %s226 = scalar_lea.vmem [#allocation3], %s225
        // Predicated region
        $region33: #{tpu_custom_call.1} parent=31 // pred_check
          %p227 = pneg %p63
        $region34: #{tpu_custom_call.1} parent=31 // pred_check_branch
          %229 = sbr.rel (%p227) target = $region36
        $region35: #{tpu_custom_call.1} parent=31 // pred_region
          %231 = dma.done %s223, 384
        $region36: #{tpu_custom_call.1} parent=31 // pred_fallthru
          _
        %s232 = sand.u32 %s78, 1
        %s233 = scalar_lea.sflag [#allocation7], %s232
        %s234 = sand.u32 %s78, 1
        %s235 = smul.addr %s234, 384
        %s236 = scalar_lea.vmem [#allocation6], %s235
        // Predicated region
        $region37: #{tpu_custom_call.1} parent=31 // pred_check
          %p237 = pneg %p91
        $region38: #{tpu_custom_call.1} parent=31 // pred_check_branch
          %239 = sbr.rel (%p237) target = $region40
        $region39: #{tpu_custom_call.1} parent=31 // pred_region
          %241 = dma.done %s233, 6144
        $region40: #{tpu_custom_call.1} parent=31 // pred_fallthru
          _
        %s242 = sand.u32 %s50, 1
        %s243 = scalar_lea.sflag [#allocation4], %s242
        %s244 = sand.u32 %s50, 1
        %s245 = smul.addr %s244, 24
        %s246 = scalar_lea.vmem [#allocation3], %s245
        %p247 = pneg %p63
        %p248 = pneg %p60
        %s249 = sand.u32 %s78, 1
        %s250 = scalar_lea.sflag [#allocation7], %s249
        %s251 = sand.u32 %s78, 1
        %s252 = smul.addr %s251, 384
        %s253 = scalar_lea.vmem [#allocation6], %s252
        %p254 = pneg %p91
        %p255 = pneg %p88
        %p256 = scmp.lt.s32.totalorder %s27, 0
        %s257 = scalar_select %p256, %s27, 0
        %s258 = scalar_lea.vmem %s2, %s257
        %p259 = pneg %p117
        %p260 = pneg %p114
        %p261 = pneg %p145
        %p262 = pneg %p142
        %s263 = smul.u32 3, %s28
        %s264 = smul.u32 48, %s28
        %p265 = scmp.lt.s32.totalorder %s27, 0
        %s266 = scalar_select %p265, %s27, 0
        %s267 = scalar_lea.vmem %s2, %s266
        %p268 = scmp.eq.s32.totalorder %s28, 0
        // Predicated region
        $region41: #{tpu_custom_call.1} parent=31 // pred_check
          %p269 = pneg %p268
        $region42: #{tpu_custom_call.1} parent=31 // pred_check_branch
          %271 = sbr.rel (%p269) target = $region44
        $region43: #{tpu_custom_call.1} parent=31 // pred_region
          %272 = vst [vmem:[#allocation2] sm:$0xff] 0.0
        $region44: #{tpu_custom_call.1} parent=31 // pred_fallthru
          _
        %v273 = vld [vmem:[%s226] sm:$0xff]
        %v274 = vld [vmem:[%s226 + $0x8] sm:$0xff]
        %v275 = vld [vmem:[%s226 + $0x10] sm:$0xff]
        %v276 = vld [vmem:[#allocation2] sm:$0xff]
        %v277 = vld [vmem:[%s236] sm:$0xff]
        %v278 = vld [vmem:[%s236 + $0x8] sm:$0xff]
        %v279 = vld [vmem:[%s236 + $0x10] sm:$0xff]
        %v280 = vld [vmem:[%s236 + $0x18] sm:$0xff]
        %v281 = vld [vmem:[%s236 + $0x20] sm:$0xff]
        %v282 = vld [vmem:[%s236 + $0x28] sm:$0xff]
        %v283 = vld [vmem:[%s236 + $0x30] sm:$0xff]
        %v284 = vld [vmem:[%s236 + $0x38] sm:$0xff]
        %v285 = vld [vmem:[%s236 + $0x40] sm:$0xff]
        %v286 = vld [vmem:[%s236 + $0x48] sm:$0xff]
        %v287 = vld [vmem:[%s236 + $0x50] sm:$0xff]
        %v288 = vld [vmem:[%s236 + $0x58] sm:$0xff]
        %v289 = vld [vmem:[%s236 + $0x60] sm:$0xff]
        %v290 = vld [vmem:[%s236 + $0x68] sm:$0xff]
        %v291 = vld [vmem:[%s236 + $0x70] sm:$0xff]
        %v292 = vld [vmem:[%s236 + $0x78] sm:$0xff]
        %v293 = vld [vmem:[%s236 + $0x80] sm:$0xff]
        %v294 = vld [vmem:[%s236 + $0x88] sm:$0xff]
        %v295 = vld [vmem:[%s236 + $0x90] sm:$0xff]
        %v296 = vld [vmem:[%s236 + $0x98] sm:$0xff]
        %v297 = vld [vmem:[%s236 + $0xa0] sm:$0xff]
        %v298 = vld [vmem:[%s236 + $0xa8] sm:$0xff]
        %v299 = vld [vmem:[%s236 + $0xb0] sm:$0xff]
        %v300 = vld [vmem:[%s236 + $0xb8] sm:$0xff]
        %v301 = vld [vmem:[%s236 + $0xc0] sm:$0xff]
        %v302 = vld [vmem:[%s236 + $0xc8] sm:$0xff]
        %v303 = vld [vmem:[%s236 + $0xd0] sm:$0xff]
        %v304 = vld [vmem:[%s236 + $0xd8] sm:$0xff]
        %v305 = vld [vmem:[%s236 + $0xe0] sm:$0xff]
        %v306 = vld [vmem:[%s236 + $0xe8] sm:$0xff]
        %v307 = vld [vmem:[%s236 + $0xf0] sm:$0xff]
        %v308 = vld [vmem:[%s236 + $0xf8] sm:$0xff]
        %v309 = vld [vmem:[%s236 + $0x100] sm:$0xff]
        %v310 = vld [vmem:[%s236 + $0x108] sm:$0xff]
        %v311 = vld [vmem:[%s236 + $0x110] sm:$0xff]
        %v312 = vld [vmem:[%s236 + $0x118] sm:$0xff]
        %v313 = vld [vmem:[%s236 + $0x120] sm:$0xff]
        %v314 = vld [vmem:[%s236 + $0x128] sm:$0xff]
        %v315 = vld [vmem:[%s236 + $0x130] sm:$0xff]
        %v316 = vld [vmem:[%s236 + $0x138] sm:$0xff]
        %v317 = vld [vmem:[%s236 + $0x140] sm:$0xff]
        %v318 = vld [vmem:[%s236 + $0x148] sm:$0xff]
        %v319 = vld [vmem:[%s236 + $0x150] sm:$0xff]
        %v320 = vld [vmem:[%s236 + $0x158] sm:$0xff]
        %v321 = vld [vmem:[%s236 + $0x160] sm:$0xff]
        %v322 = vld [vmem:[%s236 + $0x168] sm:$0xff]
        %v323 = vld [vmem:[%s236 + $0x170] sm:$0xff]
        %v324 = vld [vmem:[%s236 + $0x178] sm:$0xff]
        %325 = vmatpush.msra.mxu0 %v292
        %326 = vmatpush.msra.mxu0 %v291
        %327 = vmatpush.msra.mxu0 %v290
        %328 = vmatpush.msra.mxu0 %v289
        %329 = vmatpush.msra.mxu0 %v288
        %330 = vmatpush.msra.mxu0 %v287
        %331 = vmatpush.msra.mxu0 %v286
        %332 = vmatpush.msra.mxu0 %v285
        %333 = vmatpush.msra.mxu0 %v284
        %334 = vmatpush.msra.mxu0 %v283
        %335 = vmatpush.msra.mxu0 %v282
        %336 = vmatpush.msra.mxu0 %v281
        %337 = vmatpush.msra.mxu0 %v280
        %338 = vmatpush.msra.mxu0 %v279
        %339 = vmatpush.msra.mxu0 %v278
        %340 = vmatpush.msra.mxu0 %v277
        %341 = vmatmul.f32.gmra.mxu0 %v273
        %v342 = vpop.f32.mrf.mxu0
        %v343 = vadd.f32 0.0, %v342
        %344 = vdwg.mxu0
        %345 = vmatpush.msra.mxu0 %v308
        %346 = vmatpush.msra.mxu0 %v307
        %347 = vmatpush.msra.mxu0 %v306
        %348 = vmatpush.msra.mxu0 %v305
        %349 = vmatpush.msra.mxu0 %v304
        %350 = vmatpush.msra.mxu0 %v303
        %351 = vmatpush.msra.mxu0 %v302
        %352 = vmatpush.msra.mxu0 %v301
        %353 = vmatpush.msra.mxu0 %v300
        %354 = vmatpush.msra.mxu0 %v299
        %355 = vmatpush.msra.mxu0 %v298
        %356 = vmatpush.msra.mxu0 %v297
        %357 = vmatpush.msra.mxu0 %v296
        %358 = vmatpush.msra.mxu0 %v295
        %359 = vmatpush.msra.mxu0 %v294
        %360 = vmatpush.msra.mxu0 %v293
        %361 = vmatmul.f32.gmra.mxu0 %v274
        %v362 = vpop.f32.mrf.mxu0
        %v363 = vadd.f32 %v343, %v362
        %364 = vdwg.mxu0
        %365 = vmatpush.msra.mxu0 %v324
        %366 = vmatpush.msra.mxu0 %v323
        %367 = vmatpush.msra.mxu0 %v322
        %368 = vmatpush.msra.mxu0 %v321
        %369 = vmatpush.msra.mxu0 %v320
        %370 = vmatpush.msra.mxu0 %v319
        %371 = vmatpush.msra.mxu0 %v318
        %372 = vmatpush.msra.mxu0 %v317
        %373 = vmatpush.msra.mxu0 %v316
        %374 = vmatpush.msra.mxu0 %v315
        %375 = vmatpush.msra.mxu0 %v314
        %376 = vmatpush.msra.mxu0 %v313
        %377 = vmatpush.msra.mxu0 %v312
        %378 = vmatpush.msra.mxu0 %v311
        %379 = vmatpush.msra.mxu0 %v310
        %380 = vmatpush.msra.mxu0 %v309
        %381 = vmatmul.f32.gmra.mxu0 %v275
        %v382 = vpop.f32.mrf.mxu0
        %v383 = vadd.f32 %v363, %v382
        %384 = vdwg.mxu0
        %v385 = vadd.f32 %v276, %v383
        %386 = vst [vmem:[#allocation2] sm:$0xff] %v385
        %p387 = scmp.eq.s32.totalorder %s28, 1
        // Predicated region
        $region45: #{tpu_custom_call.1} parent=31 // pred_check
          %p388 = pneg %p387
        $region46: #{tpu_custom_call.1} parent=31 // pred_check_branch
          %390 = sbr.rel (%p388) target = $region48
        $region47: #{tpu_custom_call.1} parent=31 // pred_region
          %v391 = vld [vmem:[#allocation2] sm:$0xff]
          %v392 = vld [vmem:[%s267] sm:$0x1]
          %v394 = vperm.slane %v392, 0
          %v396 = vadd.f32 %v391, %v394
          %397 = vst [vmem:[#allocation8] sm:$0xff] %v396
        $region48: #{tpu_custom_call.1} parent=31 // pred_fallthru
          _
        // Predicated region
        $region49: #{tpu_custom_call.1} parent=31 // pred_check
          %p398 = pneg %p142
        $region50: #{tpu_custom_call.1} parent=31 // pred_check_branch
          %400 = sbr.rel (%p398) target = $region52
        $region51: #{tpu_custom_call.1} parent=31 // pred_region
          %402 = vsyncadd [#allocation5], 0
          %s403 = sadd.s32 %s27, %s26
          %s404 = smul.addr %s403, 8
          %s405 = scalar_lea.hbm %s3, %s404
          %s407 = sshll.u32 [#allocation8], 4
          %s408 = int_to_ptr.vmem [resolvable:$true] %s407
          %s409 = sshll.u32 %s405, 4
          %s410 = int_to_ptr.hbm [resolvable:$true] %s409
          %412 = dma.vmem_to_hbm [thread:$0]  %s408, 128, %s410, [#allocation5]
        $region52: #{tpu_custom_call.1} parent=31 // pred_fallthru
          _
        // Predicated region
        $region53: #{tpu_custom_call.1} parent=31 // pred_check
          %p413 = pneg %p142
        $region54: #{tpu_custom_call.1} parent=31 // pred_check_branch
          %415 = sbr.rel (%p413) target = $region56
        $region55: #{tpu_custom_call.1} parent=31 // pred_region
          %417 = dma.done [#allocation5], 128
        $region56: #{tpu_custom_call.1} parent=31 // pred_fallthru
          _
      $region32: #{tpu_custom_call.1} parent=5 // pred_fallthru
        _
      %p418 = scmp.le.s32.totalorder 2, %s16
      // Predicated region
      $region57: #{tpu_custom_call.1} parent=5 // pred_check
        %p419 = pneg %p418
      $region58: #{tpu_custom_call.1} parent=5 // pred_check_branch
        %421 = sbr.rel (%p419) target = $region60
      $region59: #{tpu_custom_call.1} parent=5 // pred_region
        %s422 = ssub.s32 %s16, 2
      $region60: #{tpu_custom_call.1} parent=5 // pred_fallthru
        _
    $region6: #{tpu_custom_call.1} parent=1 // loop_footer
      %s20 = sadd.s32 1, %s16
    $region7: #{tpu_custom_call.1} parent=1 // loop_footer_branch
      %15 = sbr.rel target = $region3
    $region8: #{tpu_custom_call.1} parent=1 // loop_exit
      _
    %423 = vsyncpa [#allocation4], 1
    %s424 = scalar_lea.sflag [#allocation4], 1
    %425 = vsyncpa %s424, 1
    %426 = vsyncpa [#allocation7], 1
    %s427 = scalar_lea.sflag [#allocation7], 1
    %428 = vsyncpa %s427, 1
    %429 = vsyncpa [#allocation5], 1
    %s430 = scalar_lea.sflag [#allocation5], 1
    %431 = vsyncpa %s430, 1

</llo_original>
